<compile_context>
chip_gen: v7x
topology: tpu7x:2x2x1
jax: 0.10.0
libtpu: 0.0.40
codegen_flags: <defaults>
</compile_context>

<pallas_src>
import functools

import jax
import jax.numpy as jnp
from jax.experimental import pallas as pl
from jax.experimental.pallas import tpu as pltpu

_LANE = 128
_LANE_CAP = 8192          # max reduction-axis tile: bounds the unrolled
                          # column-group fold to <= 64 VALU adds per step


def _round_up(a, b):
    return ((a + b - 1) // b) * b


def _vmem_limit(in_block_bytes, out_block_bytes, scratch_bytes):
    # 2x for BlockSpec double-buffering of in/out blocks, + scratch, + slack.
    need = 2 * in_block_bytes + 2 * out_block_bytes + scratch_bytes + (2 << 20)
    return int(min(max(need, 4 << 20), 60 << 20))


def _pick_rows(n_rows, row_bytes, tile_bytes, base_rows):
    """Row-tile size: fill ~tile_bytes, multiple of the sublane base, and
    leave >= 2 row tiles when possible (v7x megacore)."""
    budget = max(base_rows, (tile_bytes // max(1, row_bytes)) // base_rows * base_rows)
    rows = min(budget, _round_up(n_rows, base_rows))
    if n_rows >= 2 * base_rows:
        rows = min(rows, _round_up(pl.cdiv(n_rows, 2), base_rows))
    if rows >= n_rows:
        rows = n_rows
    return rows, pl.cdiv(n_rows, rows)


# --------------------------------------------------------------------------
# In-kernel helpers
# --------------------------------------------------------------------------
def _lane_group_fold(x, use_max):
    """Fold 128-lane column groups with pure VALU ops (no XLU).

    Returns (part, tail): `part` is the (rows, 128) fold of all full groups
    (or None), `tail` is the ragged remainder (rows, HW%128) (or None).
    avg partials are f32; max partials stay in the input dtype.
    """
    hw = x.shape[-1]
    ng, rem = hw // _LANE, hw % _LANE
    if use_max:
        cast, op = (lambda v: v), jnp.maximum
    else:
        cast, op = (lambda v: v.astype(jnp.float32)), jnp.add
    part = None
    for c in range(ng):
        seg = cast(x[:, c * _LANE:(c + 1) * _LANE])
        part = seg if part is None else op(part, seg)
    tail = cast(x[:, ng * _LANE:hw]) if rem else None
    return part, tail


def _reduce_lanes(part, tail, use_max):
    """Single cross-lane (XLU) reduce of the folded partials -> (rows, 1)."""
    if use_max:
        red, op = (lambda v: jnp.max(v, axis=-1, keepdims=True)), jnp.maximum
    else:
        red, op = (lambda v: jnp.sum(v, axis=-1, keepdims=True)), jnp.add
    out = red(part) if part is not None else None
    if tail is not None:
        t = red(tail)
        out = t if out is None else op(out, t)
    return out


# --------------------------------------------------------------------------
# Kernels
# --------------------------------------------------------------------------
def _pool_single_kernel(x_ref, o_ref, *, use_max, inv_hw):
    """num_hw_tiles == 1 fast path: no scratch, no init/finalize."""
    part, tail = _lane_group_fold(x_ref[...], use_max)
    res = _reduce_lanes(part, tail, use_max)
    if not use_max:
        res = res * inv_hw
    o_ref[...] = res.astype(o_ref.dtype)


def _pool_multi_kernel(x_ref, o_ref, acc_ref, *, use_max, inv_hw, hw, hw_tile,
                       mask_tail):
    """2-D grid (row tiles x reduction tiles) with a (rows, 128) f32
    accumulator; cross-lane reduce happens only at the last reduction step."""
    k = pl.program_id(1)
    nk = pl.num_programs(1)

    @pl.when(k == 0)
    def _init():
        init = -jnp.inf if use_max else 0.0
        acc_ref[...] = jnp.full(acc_ref.shape, init, acc_ref.dtype)

    def accumulate(x):
        part, _ = _lane_group_fold(x, use_max)     # hw_tile % 128 == 0
        if use_max:
            acc_ref[...] = jnp.maximum(acc_ref[...], part.astype(jnp.float32))
        else:
            acc_ref[...] = acc_ref[...] + part

    if mask_tail:
        # Only the last reduction step can run past HW: keep the unmasked
        # fast path on every other step.
        @pl.when(k < nk - 1)
        def _body():
            accumulate(x_ref[...])

        @pl.when(k == nk - 1)
        def _tail():
            x = x_ref[...]
            lane = jax.lax.broadcasted_iota(jnp.int32, x.shape, 1)
            valid = (k * hw_tile + lane) < hw
            pad = -jnp.inf if use_max else 0.0
            accumulate(jnp.where(valid, x, jnp.asarray(pad, x.dtype)))
    else:
        accumulate(x_ref[...])

    @pl.when(k == nk - 1)
    def _finalize():
        res = _reduce_lanes(acc_ref[...], None, use_max)
        if not use_max:
            res = res * inv_hw
        o_ref[...] = res.astype(o_ref.dtype)


def _pool_folded_kernel(x_ref, o_ref, *, use_max, inv_hw, hw, g):
    """Small-HW lane-dense path: block is (rows, g*hw) where each row holds g
    original (B*C) rows back-to-back; emit one pooled value per segment."""
    x = x_ref[...]                                          # (rows, g*hw)
    if use_max:
        parts = [jnp.max(x[:, j * hw:(j + 1) * hw], axis=-1, keepdims=True)
                 for j in range(g)]
        res = jnp.concatenate(parts, axis=-1)               # (rows, g)
    else:
        # Segmented sum on the MXU: x @ one-hot segment matrix (g*hw, g).
        ghw = g * hw
        i = jax.lax.broadcasted_iota(jnp.int32, (ghw, g), 0)
        j = jax.lax.broadcasted_iota(jnp.int32, (ghw, g), 1)
        lo = j * hw
        seg_mat = jnp.logical_and(i >= lo, i < lo + hw).astype(x.dtype)
        res = jnp.dot(x, seg_mat, preferred_element_type=jnp.float32) * inv_hw
    o_ref[...] = res.astype(o_ref.dtype)


# --------------------------------------------------------------------------
# Wrapper
# --------------------------------------------------------------------------
def global_pool(x, pooling_type="avg", tile_bytes=8 * 1024 * 1024):
    """Equivalent of GlobalPool.forward on an NCHW tensor."""
    if pooling_type == "max":
        use_max = True
    elif pooling_type == "avg":
        use_max = False
    else:
        raise ValueError("Unknown type %s" % pooling_type)

    assert x.ndim == 4
    assert jnp.issubdtype(x.dtype, jnp.floating)
    B, C, H, W = (int(d) for d in x.shape)
    BC, HW = B * C, H * W
    itemsize = jnp.dtype(x.dtype).itemsize
    # Sublane packing base: 8 rows for 4-byte, 16 for 2-byte, 32 for 1-byte.
    base_rows = max(8, 32 // itemsize)
    tile_bytes = int(min(max(tile_bytes, 64 * 1024), 16 * 1024 * 1024))
    inv_hw = 1.0 / float(HW)
    cost = pl.CostEstimate(flops=int(BC * HW), transcendentals=0,
                           bytes_accessed=int(BC * HW * itemsize + BC * itemsize))

    # ---------------- small-HW lane-dense (folded) path ----------------
    g = 1
    if HW < _LANE and BC > 1:
        for cand in range(2, min(BC, 64) + 1):
            if BC % cand == 0:
                g = cand
                if cand * HW >= 512:        # lane-dense enough; keep g small
                    break
    if g > 1:
        BCg = BC // g
        x2 = x.reshape(BCg, g * HW)
        rows, n_tiles = _pick_rows(BCg, g * HW * itemsize, tile_bytes, base_rows)
        kernel = functools.partial(_pool_folded_kernel, use_max=use_max,
                                   inv_hw=inv_hw, hw=HW, g=g)
        out = pl.pallas_call(
            kernel,
            out_shape=jax.ShapeDtypeStruct((BCg, g), x.dtype),
            grid_spec=pltpu.PrefetchScalarGridSpec(
                num_scalar_prefetch=0,
                grid=(n_tiles,),
                in_specs=[pl.BlockSpec((rows, g * HW), lambda i: (i, 0))],
                out_specs=pl.BlockSpec((rows, g), lambda i: (i, 0))),
            compiler_params=pltpu.CompilerParams(
                dimension_semantics=("parallel",),
                vmem_limit_bytes=_vmem_limit(rows * g * HW * itemsize,
                                             rows * g * itemsize, 0)),
            cost_estimate=cost,
        )(x2)
        return out.reshape(B, C, 1, 1)

    # ---------------- generic path: (BC, HW), lane-dense reduction -----
    x2 = x.reshape(BC, HW)

    lane_budget = max(_LANE, (tile_bytes // (base_rows * itemsize)) // _LANE * _LANE)
    lane_cap = min(lane_budget, _LANE_CAP)
    hw_tile = HW if HW <= lane_cap else lane_cap
    num_hw_tiles = pl.cdiv(HW, hw_tile)
    mask_tail = (HW % hw_tile) != 0

    rows, num_row_tiles = _pick_rows(BC, hw_tile * itemsize, tile_bytes, base_rows)
    in_block_bytes = rows * hw_tile * itemsize
    out_block_bytes = rows * itemsize

    if num_hw_tiles == 1:
        kernel = functools.partial(_pool_single_kernel, use_max=use_max,
                                   inv_hw=inv_hw)
        grid_spec = pltpu.PrefetchScalarGridSpec(
            num_scalar_prefetch=0,
            grid=(num_row_tiles,),
            in_specs=[pl.BlockSpec((rows, HW), lambda i: (i, 0))],
            out_specs=pl.BlockSpec((rows, 1), lambda i: (i, 0)))
        semantics = ("parallel",)
        scratch_bytes = 0
    else:
        kernel = functools.partial(_pool_multi_kernel, use_max=use_max,
                                   inv_hw=inv_hw, hw=HW, hw_tile=hw_tile,
                                   mask_tail=mask_tail)
        grid_spec = pltpu.PrefetchScalarGridSpec(
            num_scalar_prefetch=0,
            grid=(num_row_tiles, num_hw_tiles),
            in_specs=[pl.BlockSpec((rows, hw_tile), lambda i, k: (i, k))],
            out_specs=pl.BlockSpec((rows, 1), lambda i, k: (i, 0)),
            scratch_shapes=[pltpu.VMEM((rows, _LANE), jnp.float32)])
        semantics = ("parallel", "arbitrary")
        scratch_bytes = rows * _LANE * 4

    out = pl.pallas_call(
        kernel,
        out_shape=jax.ShapeDtypeStruct((BC, 1), x.dtype),
        grid_spec=grid_spec,
        compiler_params=pltpu.CompilerParams(
            dimension_semantics=semantics,
            vmem_limit_bytes=_vmem_limit(in_block_bytes, out_block_bytes,
                                         scratch_bytes)),
        cost_estimate=cost,
    )(x2)
    return out.reshape(B, C, 1, 1)


if __name__ == "__main__":
    key = jax.random.PRNGKey(0)
    k1, k2, k3 = jax.random.split(key, 3)

    # 1) Typical small NCHW feature map (single-reduction-tile fast path).
    x = jax.random.normal(k1, (2, 4, 16, 16), dtype=jnp.float32)
    y_avg = jax.block_until_ready(global_pool(x, "avg"))
    y_max = jax.block_until_ready(global_pool(x, "max"))
    assert y_avg.shape == (2, 4, 1, 1) and y_max.shape == (2, 4, 1, 1)
    assert jnp.allclose(y_avg, jnp.mean(x, axis=(2, 3), keepdims=True),
                        atol=1e-5, rtol=1e-5)
    assert jnp.allclose(y_max, jnp.max(x, axis=(2, 3), keepdims=True),
                        atol=1e-5, rtol=1e-5)

    # 2) Multi reduction-tile path (gated tail mask, partial last row block)
    #    exercised by shrinking the per-block byte budget.
    x2 = jax.random.normal(k2, (2, 10, 20, 20), dtype=jnp.float32)
    y2a = jax.block_until_ready(global_pool(x2, "avg", tile_bytes=8 * 1024))
    y2m = jax.block_until_ready(global_pool(x2, "max", tile_bytes=8 * 1024))
    assert jnp.allclose(y2a, jnp.mean(x2, axis=(2, 3), keepdims=True),
                        atol=1e-5, rtol=1e-5)
    assert jnp.allclose(y2m, jnp.max(x2, axis=(2, 3), keepdims=True),
                        atol=1e-5, rtol=1e-5)

    # 3) Small-HW (7x7) lane-dense folded path, f32 and bf16.
    x3 = jax.random.normal(k3, (2, 64, 7, 7), dtype=jnp.float32)
    y3a = jax.block_until_ready(global_pool(x3, "avg"))
    y3m = jax.block_until_ready(global_pool(x3, "max"))
    assert jnp.allclose(y3a, jnp.mean(x3, axis=(2, 3), keepdims=True),
                        atol=1e-5, rtol=1e-5)
    assert jnp.allclose(y3m, jnp.max(x3, axis=(2, 3), keepdims=True),
                        atol=1e-5, rtol=1e-5)

    x4 = x3.astype(jnp.bfloat16)
    y4a = jax.block_until_ready(global_pool(x4, "avg")).astype(jnp.float32)
    y4m = jax.block_until_ready(global_pool(x4, "max")).astype(jnp.float32)
    ref4a = jnp.mean(x4.astype(jnp.float32), axis=(2, 3), keepdims=True)
    ref4m = jnp.max(x4.astype(jnp.float32), axis=(2, 3), keepdims=True)
    assert jnp.allclose(y4a, ref4a, atol=2e-2, rtol=2e-2)
    assert jnp.allclose(y4m, ref4m, atol=2e-2, rtol=2e-2)

    print("KERNEL_OK")
</pallas_src>

<mosaic_0001>
module attributes {stable_mosaic.version = 11 : i64} {
  func.func @_pool_single_kernel(%arg0: i32, %arg1: memref<8x256xf32, #tpu.memory_space<vmem>>, %arg2: memref<8x1xf32, #tpu.memory_space<vmem>>) attributes {dimension_semantics = [#tpu.dimension_semantics<parallel>], iteration_bounds = array<i64: 1>, scalar_prefetch = 0 : i64, scratch_operands = 0 : i64, tpu.core_type = #tpu.core_type<tc>, window_params = [{transform_indices = @transform_0, window_bounds = array<i64: 8, 256>}, {transform_indices = @transform_1, window_bounds = array<i64: 8, 1>}]} {
    %c0 = arith.constant 0 : index
    %c0_0 = arith.constant 0 : index
    %0 = vector.load %arg1[%c0, %c0_0] : memref<8x256xf32, #tpu.memory_space<vmem>>, vector<8x256xf32>
    %1 = vector.extract_strided_slice %0 {offsets = [0, 0], sizes = [8, 128], strides = [1, 1]} : vector<8x256xf32> to vector<8x128xf32>
    %2 = vector.extract_strided_slice %0 {offsets = [0, 128], sizes = [8, 128], strides = [1, 1]} : vector<8x256xf32> to vector<8x128xf32>
    %3 = arith.addf %1, %2 : vector<8x128xf32>
    %cst = arith.constant dense<0.000000e+00> : vector<8xf32>
    %4 = vector.multi_reduction <add>, %3, %cst [1] : vector<8x128xf32> to vector<8xf32>
    %5 = vector.shape_cast %4 : vector<8xf32> to vector<8x1xf32>
    %cst_1 = arith.constant 3.906250e-03 : f32
    %6 = vector.broadcast %cst_1 : f32 to vector<8x1xf32>
    %7 = arith.mulf %5, %6 : vector<8x1xf32>
    %c0_2 = arith.constant 0 : index
    %c0_3 = arith.constant 0 : index
    %8 = vector.load %arg2[%c0_2, %c0_3] : memref<8x1xf32, #tpu.memory_space<vmem>>, vector<8x1xf32>
    tpu.vector_store %arg2[%c0_2, %c0_3], %7 {strides = array<i32>} : memref<8x1xf32, #tpu.memory_space<vmem>>, vector<8x1xf32>,
    return
  }
  func.func @transform_0(%arg0: i32) -> (i32, i32) {
    %c0_i32 = arith.constant 0 : i32
    %c0_i32_0 = arith.constant 0 : i32
    return %arg0, %c0_i32 : i32, i32
  }
  func.func @transform_1(%arg0: i32) -> (i32, i32) {
    %c0_i32 = arith.constant 0 : i32
    %c0_i32_0 = arith.constant 0 : i32
    return %arg0, %c0_i32 : i32, i32
  }
}

</mosaic_0001>

<llo_original>
// kernel: tpu_custom_call.1
$region0: #{tpu_custom_call.1}
  #allocation0 [shape = 'u32[]', space=smem, size = 0x4, offset = 0x4, fixed_abs, tag = 'smem constant byte address 0x4 - core index']
  #allocation1 [shape = 'u32[144,128]{1,0:T(1,128)}', space=vmem, size = 0x12000, scoped, tag = 'internal scratch']
  %s0 = inlined_call_operand.hbm [shape: f32[8,256], index: 0, kind: input, shape index: {}]
  %s1 = inlined_call_operand.vmem [shape: f32[8,1], index: 1, kind: output, shape index: {}]
  %s2 = sld [smem:[#allocation0]]
  $region18: #{tpu_custom_call.1} parent=0
    _
  %s4 = ssub.s32 1, %s2
  %s5 = scalar_select 0, %s4, %s2
  $region1: #{tpu_custom_call.1} parent=0
    #allocation2 [shape = 'u8[8192]{0}', space=vmem, size = 0x2000, scoped, tag = 'input window, operand 0, single buffered']
    #allocation3 [shape = 's32[1]{0}', space=sflag, size = 0x4, scoped, tag = 'scoped memory for tpu_custom_call.1']
    %6 = vsyncpa [#allocation3], 0
    // Predicated region
    $region2: #{tpu_custom_call.1} parent=1 // pred_check
      _
    $region3: #{tpu_custom_call.1} parent=1 // pred_check_branch
      %8 = sbr.rel (0) target = $region5
    $region4: #{tpu_custom_call.1} parent=1 // pred_region
      %s10 = ssub.s32 256, 256
      %11 = vsyncadd [#allocation3], %s10
      %s13 = sshll.u32 [#allocation2], 4
      %s14 = int_to_ptr.vmem [resolvable:$true] %s13
      %16 = dma.hbm_to_vmem [thread:$0]  %s0, 256, %s14, [#allocation3]
    $region5: #{tpu_custom_call.1} parent=1 // pred_fallthru
      _
    // Predicated region
    $region6: #{tpu_custom_call.1} parent=1 // pred_check
      _
    $region7: #{tpu_custom_call.1} parent=1 // pred_check_branch
      %18 = sbr.rel (0) target = $region9
    $region8: #{tpu_custom_call.1} parent=1 // pred_region
      %19 = dma.done [#allocation3], 256
    $region9: #{tpu_custom_call.1} parent=1 // pred_fallthru
      _
    %v20 = vld [vmem:[#allocation2] sm:$0xff]
    %v21 = vld [vmem:[#allocation2 + $0x8] sm:$0xff]
    %v22 = vadd.f32 %v20, %v21
    %23 = vadd.xlane.f32.xlu0 %v22
    %v24 = vpop.xlane.xlu0 %23
    %v25 = vmul.f32 %v24, 0.00390625
    %vm26 = vcmask 7168
    %27 = vst.msk [vmem:[%s1] sm:$0xff] %vm26, %v25
    // Predicated region
    $region10: #{tpu_custom_call.1} parent=1 // pred_check
      _
    $region11: #{tpu_custom_call.1} parent=1 // pred_check_branch
      %29 = sbr.rel (0) target = $region13
    $region12: #{tpu_custom_call.1} parent=1 // pred_region
      _
    $region13: #{tpu_custom_call.1} parent=1 // pred_fallthru
      _
    // Predicated region
    $region14: #{tpu_custom_call.1} parent=1 // pred_check
      _
    $region15: #{tpu_custom_call.1} parent=1 // pred_check_branch
      %31 = sbr.rel (0) target = $region17
    $region16: #{tpu_custom_call.1} parent=1 // pred_region
      _
    $region17: #{tpu_custom_call.1} parent=1 // pred_fallthru
      _
    %32 = vsyncpa [#allocation3], 1

</llo_original>
